<compile_context>
chip_gen: v7x
topology: tpu7x:2x2x1
jax: 0.10.0
libtpu: 0.0.40
codegen_flags: <defaults>
</compile_context>

<pallas_src>
import jax
import jax.numpy as jnp
from jax.experimental import pallas as pl
from jax.experimental.pallas import tpu as pltpu

N_HIDDEN = 32            # n in the PyTorch module
C_IN = 4 * N_HIDDEN      # 128 = fc input features
C_OUT = 3                # fc output features


def _fc_kernel(x_ref, w_ref, b_ref, o_ref):
    # x_ref: (TP, 128)  w_ref: (128, 3)  b_ref: (1, 3)  o_ref: (TP, 3)
    acc = jnp.dot(x_ref[...], w_ref[...], preferred_element_type=jnp.float32)
    o_ref[...] = (acc + b_ref[...]).astype(o_ref.dtype)


def _round_up(x, m):
    return ((x + m - 1) // m) * m


def _choose_tile_p(p_all, *, max_tile=2048, min_grid_steps=8):
    """Pick the largest point tile (multiple of 8, <= max_tile) that still
    leaves >= min_grid_steps grid iterations (keeps both v7x TCs busy)."""
    tp = _round_up(max(1, -(-p_all // min_grid_steps)), 8)
    return max(8, min(max_tile, tp))


def refine_fc(feat, weight, bias, *, tile_p=None):
    """feat: (p_all, 128) f32; weight: (3, 128) (PyTorch layout); bias: (3,)"""
    p_all, c_in = feat.shape
    assert c_in == C_IN
    if tile_p is None:
        tile_p = _choose_tile_p(p_all)

    grid = (pl.cdiv(p_all, tile_p),)        # ragged last block handled by Pallas
    w_t = weight.T                          # (128, 3): done under jit, fused by XLA
    b2 = bias.reshape(1, C_OUT)             # (1, 3)

    return pl.pallas_call(
        _fc_kernel,
        out_shape=jax.ShapeDtypeStruct((p_all, C_OUT), jnp.float32),
        grid=grid,
        in_specs=[
            pl.BlockSpec((tile_p, C_IN), lambda i: (i, 0)),
            pl.BlockSpec((C_IN, C_OUT), lambda i: (0, 0)),
            pl.BlockSpec((1, C_OUT), lambda i: (0, 0)),
        ],
        out_specs=pl.BlockSpec((tile_p, C_OUT), lambda i: (i, 0)),
        compiler_params=pltpu.CompilerParams(
            dimension_semantics=("parallel",)),
    )(feat, w_t, b2)


def new_pt_refine_forward(pxo_feat, max_points, weight, bias):
    """Equivalent of new_pt_Refine.forward.

    pxo_feat : (p_all, 4*n) per-point features (output of ref_pt, see TODO).
    returns  : (b_num, max_points, 3)
    """
    p_all = pxo_feat.shape[0]
    b_num = p_all // max_points
    y = refine_fc(pxo_feat, weight, bias)               # (p_all, 3)
    # pt_flow_trans + fc  ==  per-point fc, then reshape (p_all,3)->(b_num,max_points,3)
    return y.reshape(b_num, max_points, C_OUT)


# jit so weight.T / bias.reshape / final reshape fuse into the XLA program.
new_pt_refine_forward_jit = jax.jit(new_pt_refine_forward, static_argnums=(1,))


if __name__ == "__main__":
    key = jax.random.PRNGKey(0)
    k_feat, k_w, k_b = jax.random.split(key, 3)

    # PyTorch nn.Linear(128, 3): weight (3, 128), bias (3,)
    bound = 1.0 / (C_IN ** 0.5)
    weight = jax.random.uniform(k_w, (C_OUT, C_IN), jnp.float32, -bound, bound)
    bias = jax.random.uniform(k_b, (C_OUT,), jnp.float32, -bound, bound)

    # --- case 1: small, tile divides p_all -------------------------------
    max_points, b_num = 16, 4
    p_all = b_num * max_points                     # 64 points
    feat = jax.random.normal(k_feat, (p_all, C_IN), dtype=jnp.float32)

    out = new_pt_refine_forward_jit(feat, max_points, weight, bias)
    out = jax.block_until_ready(out)

    ref = (feat @ weight.T + bias).reshape(b_num, max_points, C_OUT)
    assert out.shape == (b_num, max_points, C_OUT)
    assert jnp.allclose(out, ref, atol=1e-5, rtol=1e-5)

    # --- case 2: p_all NOT a multiple of the tile (exercises the masked
    # boundary block, so tile size never shrinks for arbitrary point counts) --
    max_points2, b_num2 = 10, 3
    p_all2 = b_num2 * max_points2                  # 30 points
    feat2 = jax.random.normal(k_feat, (p_all2, C_IN), dtype=jnp.float32)

    out2 = new_pt_refine_forward_jit(feat2, max_points2, weight, bias)
    out2 = jax.block_until_ready(out2)

    ref2 = (feat2 @ weight.T + bias).reshape(b_num2, max_points2, C_OUT)
    assert out2.shape == (b_num2, max_points2, C_OUT)
    assert jnp.allclose(out2, ref2, atol=1e-5, rtol=1e-5)

    print("KERNEL_OK")
</pallas_src>

<mosaic_0001>
module attributes {stable_mosaic.version = 11 : i64} {
  func.func @_fc_kernel(%arg0: i32, %arg1: memref<8x128xf32, #tpu.memory_space<vmem>>, %arg2: memref<128x3xf32, #tpu.memory_space<vmem>>, %arg3: memref<1x3xf32, #tpu.memory_space<vmem>>, %arg4: memref<8x3xf32, #tpu.memory_space<vmem>>) attributes {dimension_semantics = [#tpu.dimension_semantics<parallel>], iteration_bounds = array<i64: 8>, scalar_prefetch = 0 : i64, scratch_operands = 0 : i64, tpu.core_type = #tpu.core_type<tc>, window_params = [{transform_indices = @transform_0, window_bounds = array<i64: 8, 128>}, {pipeline_mode = #tpu.pipeline_mode<synchronous>, transform_indices = @transform_1, window_bounds = array<i64: 128, 3>}, {pipeline_mode = #tpu.pipeline_mode<synchronous>, transform_indices = @transform_2, window_bounds = array<i64: 1, 3>}, {transform_indices = @transform_3, window_bounds = array<i64: 8, 3>}]} {
    %c0 = arith.constant 0 : index
    %c0_0 = arith.constant 0 : index
    %0 = vector.load %arg1[%c0, %c0_0] : memref<8x128xf32, #tpu.memory_space<vmem>>, vector<8x128xf32>
    %c0_1 = arith.constant 0 : index
    %c0_2 = arith.constant 0 : index
    %1 = vector.load %arg2[%c0_1, %c0_2] : memref<128x3xf32, #tpu.memory_space<vmem>>, vector<128x3xf32>
    %cst = arith.constant dense<0.000000e+00> : vector<8x3xf32>
    %2 = tpu.matmul %0, %1, %cst {dimension_numbers = #tpu.dot_dimension_numbers<[1], [0], [0], [1], [0, 0, 1, 1], [], []>} : vector<8x128xf32>, vector<128x3xf32>, vector<8x3xf32> -> vector<8x3xf32>
    %c0_3 = arith.constant 0 : index
    %c0_4 = arith.constant 0 : index
    %3 = vector.load %arg3[%c0_3, %c0_4] : memref<1x3xf32, #tpu.memory_space<vmem>>, vector<1x3xf32>
    %4 = vector.broadcast %3 : vector<1x3xf32> to vector<8x3xf32>
    %5 = arith.addf %2, %4 : vector<8x3xf32>
    %c0_5 = arith.constant 0 : index
    %c0_6 = arith.constant 0 : index
    %6 = vector.load %arg4[%c0_5, %c0_6] : memref<8x3xf32, #tpu.memory_space<vmem>>, vector<8x3xf32>
    tpu.vector_store %arg4[%c0_5, %c0_6], %5 {strides = array<i32>} : memref<8x3xf32, #tpu.memory_space<vmem>>, vector<8x3xf32>,
    return
  }
  func.func @transform_0(%arg0: i32) -> (i32, i32) {
    %c0_i32 = arith.constant 0 : i32
    %c0_i32_0 = arith.constant 0 : i32
    return %arg0, %c0_i32 : i32, i32
  }
  func.func @transform_1(%arg0: i32) -> (i32, i32) {
    %c0_i32 = arith.constant 0 : i32
    %c0_i32_0 = arith.constant 0 : i32
    %c0_i32_1 = arith.constant 0 : i32
    return %c0_i32, %c0_i32_0 : i32, i32
  }
  func.func @transform_2(%arg0: i32) -> (i32, i32) {
    %c0_i32 = arith.constant 0 : i32
    %c0_i32_0 = arith.constant 0 : i32
    %c0_i32_1 = arith.constant 0 : i32
    return %c0_i32, %c0_i32_0 : i32, i32
  }
  func.func @transform_3(%arg0: i32) -> (i32, i32) {
    %c0_i32 = arith.constant 0 : i32
    %c0_i32_0 = arith.constant 0 : i32
    return %arg0, %c0_i32 : i32, i32
  }
}

</mosaic_0001>

<llo_original>
// kernel: new_pt_refine_forward.1
$region0: #{new_pt_refine_forward.1}
  #allocation0 [shape = 'u32[]', space=smem, size = 0x4, offset = 0x4, fixed_abs, tag = 'smem constant byte address 0x4 - core index']
  #allocation1 [shape = 'u32[144,128]{1,0:T(1,128)}', space=vmem, size = 0x12000, scoped, tag = 'internal scratch']
  %s0 = inlined_call_operand.vmem [shape: f32[64,128], index: 0, kind: input, shape index: {}]
  %s1 = inlined_call_operand.vmem [shape: f32[128,3], index: 1, kind: input, shape index: {}]
  %s2 = inlined_call_operand.vmem [shape: f32[1,3], index: 2, kind: input, shape index: {}]
  %s3 = inlined_call_operand.vmem [shape: f32[64,3], index: 3, kind: output, shape index: {}]
  %s4 = sld [smem:[#allocation0]]
  $region45: #{new_pt_refine_forward.1} parent=0
    _
  %s6 = ssub.s32 1, %s4
  %s7 = scalar_select 0, %s6, %s4
  loop: start=0, step=1, limit=10
  $region2: #{new_pt_refine_forward.1} parent=0 // loop_pre_header
    _
  $region3: #{new_pt_refine_forward.1} parent=0 // loop_header
    %s9 = sphi 0, %s13
    %p10 = scmp.ge.s32.totalorder %s9, 10
    %s19 = sphi 0, %s21
    %s22 = sphi 0, %s19
    %s23 = sphi 0, %s22
    %s39 = sphi 0, %s23
    %s43 = sphi 0, %s43
    %s45 = sphi 0, %s43
    %s46 = sphi 0, %s45
    %s60 = sphi 0, %s46
    %s64 = sphi 0, %s64
    %s66 = sphi 0, %s64
    %s67 = sphi 0, %s66
    %s81 = sphi 0, %s67
    %s87 = sphi 0, %s89
    %s90 = sphi 0, %s87
    %s91 = sphi 0, %s90
    %s107 = sphi 0, %s91
  $region4: #{new_pt_refine_forward.1} parent=0 // loop_header_branch
    %12 = sbr.rel (%p10) target = $region8
  $region5: #{new_pt_refine_forward.1} parent=0 // loop_body
    %s14 = ssub.s32 %s9, 1
    %s15 = ssub.s32 %s9, 2
    %s16 = sadd.s32 %s9, 1
    %s17 = ssub.s32 %s9, %s16
    %p18 = scmp.eq.s32.totalorder %s17, 0
    %s20 = sadd.s32 %s19, 1
    %s21 = scalar_select %p18, %s19, %s20
    %p24 = pneg %p18
    %p25 = scmp.eq.s32.totalorder %s9, 7
    %p26 = por %p24, %p25
    %p27 = scmp.ne.s32.totalorder %s19, %s22
    %p28 = scmp.eq.s32.totalorder %s9, 0
    %p29 = por %p27, %p28
    %p30 = scmp.ne.s32.totalorder %s19, %s22
    %p31 = scmp.eq.s32.totalorder %s14, 7
    %p32 = por %p30, %p31
    %p33 = scmp.ne.s32.totalorder %s22, %s23
    %p34 = scmp.eq.s32.totalorder %s14, 0
    %p35 = por %p33, %p34
    %p36 = scmp.ne.s32.totalorder %s22, %s23
    %p37 = scmp.eq.s32.totalorder %s15, 7
    %p38 = por %p36, %p37
    %p40 = scmp.ne.s32.totalorder %s23, %s39
    %p41 = scmp.eq.s32.totalorder %s15, 0
    %p42 = por %p40, %p41
    %s44 = sadd.s32 %s43, 1
    %p47 = scmp.eq.s32.totalorder %s9, 7
    %p48 = scmp.ne.s32.totalorder %s43, %s45
    %p49 = scmp.eq.s32.totalorder %s9, 0
    %p50 = por %p48, %p49
    %p51 = scmp.ne.s32.totalorder %s43, %s45
    %p52 = scmp.eq.s32.totalorder %s14, 7
    %p53 = por %p51, %p52
    %p54 = scmp.ne.s32.totalorder %s45, %s46
    %p55 = scmp.eq.s32.totalorder %s14, 0
    %p56 = por %p54, %p55
    %p57 = scmp.ne.s32.totalorder %s45, %s46
    %p58 = scmp.eq.s32.totalorder %s15, 7
    %p59 = por %p57, %p58
    %p61 = scmp.ne.s32.totalorder %s46, %s60
    %p62 = scmp.eq.s32.totalorder %s15, 0
    %p63 = por %p61, %p62
    %s65 = sadd.s32 %s64, 1
    %p68 = scmp.eq.s32.totalorder %s9, 7
    %p69 = scmp.ne.s32.totalorder %s64, %s66
    %p70 = scmp.eq.s32.totalorder %s9, 0
    %p71 = por %p69, %p70
    %p72 = scmp.ne.s32.totalorder %s64, %s66
    %p73 = scmp.eq.s32.totalorder %s14, 7
    %p74 = por %p72, %p73
    %p75 = scmp.ne.s32.totalorder %s66, %s67
    %p76 = scmp.eq.s32.totalorder %s14, 0
    %p77 = por %p75, %p76
    %p78 = scmp.ne.s32.totalorder %s66, %s67
    %p79 = scmp.eq.s32.totalorder %s15, 7
    %p80 = por %p78, %p79
    %p82 = scmp.ne.s32.totalorder %s67, %s81
    %p83 = scmp.eq.s32.totalorder %s15, 0
    %p84 = por %p82, %p83
    %s85 = ssub.s32 %s9, %s16
    %p86 = scmp.eq.s32.totalorder %s85, 0
    %s88 = sadd.s32 %s87, 1
    %s89 = scalar_select %p86, %s87, %s88
    %p92 = pneg %p86
    %p93 = scmp.eq.s32.totalorder %s9, 7
    %p94 = por %p92, %p93
    %p95 = scmp.ne.s32.totalorder %s87, %s90
    %p96 = scmp.eq.s32.totalorder %s9, 0
    %p97 = por %p95, %p96
    %p98 = scmp.ne.s32.totalorder %s87, %s90
    %p99 = scmp.eq.s32.totalorder %s14, 7
    %p100 = por %p98, %p99
    %p101 = scmp.ne.s32.totalorder %s90, %s91
    %p102 = scmp.eq.s32.totalorder %s14, 0
    %p103 = por %p101, %p102
    %p104 = scmp.ne.s32.totalorder %s90, %s91
    %p105 = scmp.eq.s32.totalorder %s15, 7
    %p106 = por %p104, %p105
    %p108 = scmp.ne.s32.totalorder %s91, %s107
    %p109 = scmp.eq.s32.totalorder %s15, 0
    %p110 = por %p108, %p109
    %p111 = scmp.le.s32.totalorder 1, %s9
    %p112 = scmp.lt.s32.totalorder %s9, 9
    %p113 = pnand %p111, %p112
    %p114 = pneg %p113
    // Predicated region
    $region9: #{new_pt_refine_forward.1} parent=5 // pred_check
      _
    $region10: #{new_pt_refine_forward.1} parent=5 // pred_check_branch
      %116 = sbr.rel (%p113) target = $region12
    $region11: #{new_pt_refine_forward.1} parent=5 // pred_region
      %s117 = ssub.s32 %s9, 1
      // Predicated region
      $region13: #{new_pt_refine_forward.1} parent=11 // pred_check
        %p118 = pneg %p56
      $region14: #{new_pt_refine_forward.1} parent=11 // pred_check_branch
        %120 = sbr.rel (%p118) target = $region16
      $region15: #{new_pt_refine_forward.1} parent=11 // pred_region
        _
      $region16: #{new_pt_refine_forward.1} parent=11 // pred_fallthru
        _
      // Predicated region
      $region17: #{new_pt_refine_forward.1} parent=11 // pred_check
        %p121 = pneg %p77
      $region18: #{new_pt_refine_forward.1} parent=11 // pred_check_branch
        %123 = sbr.rel (%p121) target = $region20
      $region19: #{new_pt_refine_forward.1} parent=11 // pred_region
        _
      $region20: #{new_pt_refine_forward.1} parent=11 // pred_fallthru
        _
    $region12: #{new_pt_refine_forward.1} parent=5 // pred_fallthru
      _
    %p124 = scmp.lt.s32.totalorder %s9, 8
    // Predicated region
    $region21: #{new_pt_refine_forward.1} parent=5 // pred_check
      %p125 = pneg %p124
    $region22: #{new_pt_refine_forward.1} parent=5 // pred_check_branch
      %127 = sbr.rel (%p125) target = $region24
    $region23: #{new_pt_refine_forward.1} parent=5 // pred_region
      // Predicated region
      $region25: #{new_pt_refine_forward.1} parent=23 // pred_check
        %p128 = pneg %p29
      $region26: #{new_pt_refine_forward.1} parent=23 // pred_check_branch
        %130 = sbr.rel (%p128) target = $region28
      $region27: #{new_pt_refine_forward.1} parent=23 // pred_region
        %p131 = scmp.lt.s32.totalorder %s9, 7
        %s132 = scalar_select %p131, %s9, 7
        %s133 = smul.addr %s132, 8
        %s134 = scalar_lea.vmem %s0, %s133
      $region28: #{new_pt_refine_forward.1} parent=23 // pred_fallthru
        _
    $region24: #{new_pt_refine_forward.1} parent=5 // pred_fallthru
      _
    %p135 = scmp.le.s32.totalorder 1, %s9
    %p136 = scmp.lt.s32.totalorder %s9, 9
    %p137 = pnand %p135, %p136
    %p138 = pneg %p137
    // Predicated region
    $region29: #{new_pt_refine_forward.1} parent=5 // pred_check
      _
    $region30: #{new_pt_refine_forward.1} parent=5 // pred_check_branch
      %140 = sbr.rel (%p137) target = $region32
    $region31: #{new_pt_refine_forward.1} parent=5 // pred_region
      %s141 = ssub.s32 %s9, 1
      %p142 = scmp.lt.s32.totalorder %s14, 7
      %s143 = scalar_select %p142, %s14, 7
      %s144 = smul.addr %s143, 8
      %s145 = scalar_lea.vmem %s0, %s144
      %p146 = pneg %p35
      %p147 = pneg %p32
      %p148 = pneg %p56
      %p149 = pneg %p53
      %p150 = pneg %p77
      %p151 = pneg %p74
      %p152 = pneg %p103
      %p153 = pneg %p100
      %p154 = scmp.lt.s32.totalorder %s14, 7
      %s155 = scalar_select %p154, %s14, 7
      %s156 = smul.addr %s155, 8
      %s157 = scalar_lea.vmem %s3, %s156
      %p158 = scmp.lt.s32.totalorder %s14, 7
      %s159 = scalar_select %p158, %s14, 7
      %s160 = smul.addr %s159, 8
      %s161 = scalar_lea.vmem %s0, %s160
      %p162 = scmp.lt.s32.totalorder %s14, 7
      %s163 = scalar_select %p162, %s14, 7
      %s164 = smul.addr %s163, 8
      %s165 = scalar_lea.vmem %s3, %s164
      %v166 = vld [vmem:[%s161] sm:$0xff]
      %v167 = vld [vmem:[%s1] sm:$0xff]
      %v168 = vld [vmem:[%s1 + $0x8] sm:$0xff]
      %v169 = vld [vmem:[%s1 + $0x10] sm:$0xff]
      %v170 = vld [vmem:[%s1 + $0x18] sm:$0xff]
      %v171 = vld [vmem:[%s1 + $0x20] sm:$0xff]
      %v172 = vld [vmem:[%s1 + $0x28] sm:$0xff]
      %v173 = vld [vmem:[%s1 + $0x30] sm:$0xff]
      %v174 = vld [vmem:[%s1 + $0x38] sm:$0xff]
      %v175 = vld [vmem:[%s1 + $0x40] sm:$0xff]
      %v176 = vld [vmem:[%s1 + $0x48] sm:$0xff]
      %v177 = vld [vmem:[%s1 + $0x50] sm:$0xff]
      %v178 = vld [vmem:[%s1 + $0x58] sm:$0xff]
      %v179 = vld [vmem:[%s1 + $0x60] sm:$0xff]
      %v180 = vld [vmem:[%s1 + $0x68] sm:$0xff]
      %v181 = vld [vmem:[%s1 + $0x70] sm:$0xff]
      %v182 = vld [vmem:[%s1 + $0x78] sm:$0xff]
      %v183 = vld [vmem:[%s2] sm:$0x1]
      %v185 = vlaneseq
      %v186 = vshrl.u32 %v185, 7
      %v187 = vsub.s32 0, %v186
      %v188 = vrot.slane %v183, %v187
      %190 = vmatprep.subr.mxu0 0.0
      %191 = vmatpush1.msra.mxu0 %v167
      %192 = vmatprep.subr.mxu0 0.0
      %193 = vmatpush1.msra.mxu0 %v168
      %194 = vmatprep.subr.mxu0 0.0
      %195 = vmatpush1.msra.mxu0 %v169
      %196 = vmatprep.subr.mxu0 0.0
      %197 = vmatpush1.msra.mxu0 %v170
      %198 = vmatprep.subr.mxu0 0.0
      %199 = vmatpush1.msra.mxu0 %v171
      %200 = vmatprep.subr.mxu0 0.0
      %201 = vmatpush1.msra.mxu0 %v172
      %202 = vmatprep.subr.mxu0 0.0
      %203 = vmatpush1.msra.mxu0 %v173
      %204 = vmatprep.subr.mxu0 0.0
      %205 = vmatpush1.msra.mxu0 %v174
      %206 = vmatprep.subr.mxu0 0.0
      %207 = vmatpush1.msra.mxu0 %v175
      %208 = vmatprep.subr.mxu0 0.0
      %209 = vmatpush1.msra.mxu0 %v176
      %210 = vmatprep.subr.mxu0 0.0
      %211 = vmatpush1.msra.mxu0 %v177
      %212 = vmatprep.subr.mxu0 0.0
      %213 = vmatpush1.msra.mxu0 %v178
      %214 = vmatprep.subr.mxu0 0.0
      %215 = vmatpush1.msra.mxu0 %v179
      %216 = vmatprep.subr.mxu0 0.0
      %217 = vmatpush1.msra.mxu0 %v180
      %218 = vmatprep.subr.mxu0 0.0
      %219 = vmatpush1.msra.mxu0 %v181
      %220 = vmatprep.subr.mxu0 0.0
      %221 = vmatpush1.msra.mxu0 %v182
      %222 = vmatprep.subr.mxu0 0.0
      %223 = vmatpush1.msra.mxu0 0.0
      %224 = vmatprep.subr.mxu0 0.0
      %225 = vmatpush1.msra.mxu0 0.0
      %226 = vmatprep.subr.mxu0 0.0
      %227 = vmatpush1.msra.mxu0 0.0
      %228 = vmatprep.subr.mxu0 0.0
      %229 = vmatpush1.msra.mxu0 0.0
      %230 = vmatprep.subr.mxu0 0.0
      %231 = vmatpush1.msra.mxu0 0.0
      %232 = vmatprep.subr.mxu0 0.0
      %233 = vmatpush1.msra.mxu0 0.0
      %234 = vmatprep.subr.mxu0 0.0
      %235 = vmatpush1.msra.mxu0 0.0
      %236 = vmatprep.subr.mxu0 0.0
      %237 = vmatpush1.msra.mxu0 0.0
      %238 = vmatprep.subr.mxu0 0.0
      %239 = vmatpush1.msra.mxu0 0.0
      %240 = vmatprep.subr.mxu0 0.0
      %241 = vmatpush1.msra.mxu0 0.0
      %242 = vmatprep.subr.mxu0 0.0
      %243 = vmatpush1.msra.mxu0 0.0
      %244 = vmatprep.subr.mxu0 0.0
      %245 = vmatpush1.msra.mxu0 0.0
      %246 = vmatprep.subr.mxu0 0.0
      %247 = vmatpush1.msra.mxu0 0.0
      %248 = vmatprep.subr.mxu0 0.0
      %249 = vmatpush1.msra.mxu0 0.0
      %250 = vmatprep.subr.mxu0 0.0
      %251 = vmatpush1.msra.mxu0 0.0
      %252 = vmatprep.subr.mxu0 0.0
      %253 = vmatpush1.msra.mxu0 0.0
      %254 = vmatprep.mubr.f32.mxu0 0.0
      %255 = vmatmul.mubr.f32.gmra.mrb[0].mxu0 %v166
      %v256 = vpop.f32.mrb[0].mxu0
      %v257 = vadd.f32 %v188, %v256
      %v258 = vpop.f32.mrb[0].mxu0
      %259 = vdwg.mxu0
      %vm260 = vcmask 23552
      %261 = vst.msk [vmem:[%s165] sm:$0xff] %vm260, %v257
      %p262 = scmp.lt.s32.totalorder %s14, 7
      %s263 = scalar_select %p262, %s14, 7
      %s264 = smul.addr %s263, 8
      %s265 = scalar_lea.vmem %s3, %s264
      // Predicated region
      $region33: #{new_pt_refine_forward.1} parent=31 // pred_check
        %p266 = pneg %p100
      $region34: #{new_pt_refine_forward.1} parent=31 // pred_check_branch
        %268 = sbr.rel (%p266) target = $region36
      $region35: #{new_pt_refine_forward.1} parent=31 // pred_region
        _
      $region36: #{new_pt_refine_forward.1} parent=31 // pred_fallthru
        _
    $region32: #{new_pt_refine_forward.1} parent=5 // pred_fallthru
      _
    %p269 = scmp.le.s32.totalorder 2, %s9
    // Predicated region
    $region37: #{new_pt_refine_forward.1} parent=5 // pred_check
      %p270 = pneg %p269
    $region38: #{new_pt_refine_forward.1} parent=5 // pred_check_branch
      %272 = sbr.rel (%p270) target = $region40
    $region39: #{new_pt_refine_forward.1} parent=5 // pred_region
      %s273 = ssub.s32 %s9, 2
      // Predicated region
      $region41: #{new_pt_refine_forward.1} parent=39 // pred_check
        %p274 = pneg %p106
      $region42: #{new_pt_refine_forward.1} parent=39 // pred_check_branch
        %276 = sbr.rel (%p274) target = $region44
      $region43: #{new_pt_refine_forward.1} parent=39 // pred_region
        %p277 = scmp.lt.s32.totalorder %s15, 7
        %s278 = scalar_select %p277, %s15, 7
        %s279 = smul.addr %s278, 8
        %s280 = scalar_lea.vmem %s3, %s279
      $region44: #{new_pt_refine_forward.1} parent=39 // pred_fallthru
        _
    $region40: #{new_pt_refine_forward.1} parent=5 // pred_fallthru
      _
  $region6: #{new_pt_refine_forward.1} parent=0 // loop_footer
    %s13 = sadd.s32 1, %s9
  $region7: #{new_pt_refine_forward.1} parent=0 // loop_footer_branch
    %8 = sbr.rel target = $region3
  $region8: #{new_pt_refine_forward.1} parent=0 // loop_exit
    _

</llo_original>
